<compile_context>
chip_gen: v7x
topology: tpu7x:2x2x1
jax: 0.10.0
libtpu: 0.0.40
codegen_flags: <defaults>
</compile_context>

<pallas_src>
import functools

import jax
import jax.numpy as jnp
import numpy as np
from jax import lax
from jax.experimental import pallas as pl
from jax.experimental.pallas import tpu as pltpu

# Module __init__ args and forward() defaults.
DELTA_VAR = 0.1
DELTA_DIST = 0.3
ALPHA = 1.0
BETA = 1.0
GAMMA = 0.001          # unused in forward (regularizer term is dead code)
SIGM_FACTOR = 5.0
PULL_FACTOR = 0.1

_MIB = 1024 * 1024


def _round_up(x, m):
    return (x + m - 1) // m * m


def _device_kind():
    try:
        return jax.devices()[0].device_kind.lower()
    except Exception:
        return ""


def _generation_tuning(batch):
    """Per-generation VMEM limit, in-kernel intermediate budget, dim semantics."""
    kind = _device_kind()
    is_v7 = "v7" in kind
    big_vmem = any(g in kind for g in ("v4", "v5", "v6"))     # 128 MiB parts
    if is_v7:
        vmem_limit = 48 * _MIB       # 64 MiB per TensorCore on v7x
        tile_budget = 24 * _MIB
    elif big_vmem:
        vmem_limit = 96 * _MIB       # 128 MiB VMEM on v4 / v5e / v6e
        tile_budget = 64 * _MIB
    else:
        vmem_limit = 48 * _MIB       # known-good conservative default
        tile_budget = 24 * _MIB

    dims = ("parallel", "arbitrary", "arbitrary")
    # v7x has two TensorCores per chip: shard the batch axis across them.
    if (is_v7 and batch % 2 == 0 and hasattr(pltpu, "CORE_PARALLEL")
            and hasattr(pltpu, "ARBITRARY")):
        dims = (pltpu.CORE_PARALLEL, pltpu.ARBITRARY, pltpu.ARBITRARY)
    # TODO(synk): for B == 1 on v7x, split the pixel-tile axis across the two
    # cores with per-core accumulators combined at the end.
    return vmem_limit, tile_budget, dims


def _auto_pixel_tile(hw, n_sp, ep1, tile_budget):
    """Largest pixel tile whose dominant per-step intermediates fit the budget.

    The biggest live value per step is the (C, hw_t) one-hot (bf16 + compare
    mask); the gathered (E+1, hw_t) f32 result and the double-buffered input
    blocks are a small additive term.
    """
    hw_full = _round_up(hw, 128)
    tile = 128
    for cand in (256, 512, 1024, 2048):
        est = 6 * n_sp * cand + 24 * ep1 * cand
        if est <= tile_budget:
            tile = cand
    return min(tile, hw_full)


def _rag_contrastive_kernel(emb_ref, seg_ref, edge_ref, w_ref, out_ref,
                            sum_acc, gmat_ref, intra_acc, edge_acc, *,
                            n_sp, n_edges, delta_var, delta_dist, alpha, beta,
                            sigm_factor, pull_factor):
    C = n_sp
    ep1 = sum_acc.shape[0]          # E + 1
    E = ep1 - 1
    hw_t = seg_ref.shape[-1]
    ne_pad = w_ref.shape[-1]

    p = pl.program_id(1)            # 0: accumulate sums/counts, 1: intra + edges
    t = pl.program_id(2)            # pixel tile
    n_t = pl.num_programs(2)

    # (C, hw_t) one-hot; pixels stay lane-dense, no transposes needed anywhere.
    # Padded pixels (seg == -1) match no superpixel and contribute nothing to
    # either pass (their gathered 1/count is 0 in pass 1).
    seg = seg_ref[0].astype(jnp.int32)                          # (1, hw_t)
    oh_bf = (seg == lax.broadcasted_iota(jnp.int32, (C, hw_t), 0)
             ).astype(jnp.bfloat16)                             # (C, hw_t)

    # ---- pass 0: [embedding sums ; pixel counts] with ONE fused MXU matmul --
    @pl.when(p == 0)
    def _pass0():
        @pl.when(t == 0)
        def _init():
            sum_acc[...] = jnp.zeros_like(sum_acc)

        emb = emb_ref[0]                                        # (E+1, hw_t) bf16
        # contract the shared pixel (lane) axis: (E+1, hw_t) x (C, hw_t)^T.
        sum_acc[...] += lax.dot_general(
            emb, oh_bf, (((1,), (1,)), ((), ())),
            preferred_element_type=jnp.float32)                 # (E+1, C)

    # ---- pass 1: gather-form intra term + one-time edge (inter) term --------
    @pl.when(p == 1)
    def _pass1():
        @pl.when(t == 0)
        def _finalize_and_edges():
            s = sum_acc[...]                                    # (E+1, C)
            cnt = s[E:E + 1, :]                                 # (1, C) counts
            # Empty superpixels: guarded with max(cnt, 1) -> zero mean (the
            # torch reference would divide by 0 and produce NaN instead).
            inv_cnt = pl.reciprocal(jnp.maximum(cnt, 1.0), approx=True)
            m = s[:E, :]                                        # (E, C) raw sums
            # normalizing the sums == normalizing the means (1/cnt cancels).
            m = m * lax.rsqrt(jnp.sum(m * m, axis=0, keepdims=True) + 1e-20)
            gmat_ref[:E, :] = m.astype(jnp.bfloat16)            # bf16 written once
            gmat_ref[E:E + 1, :] = inv_cnt.astype(jnp.bfloat16)
            intra_acc[...] = jnp.zeros_like(intra_acc)

            # Edge (inter) term: f32 gather of the normalized means, once per
            # batch element.  K = C fills the MXU depth.
            e = edge_ref[0]                                     # (2, ne_pad) int32
            iota_c = lax.broadcasted_iota(jnp.int32, (C, ne_pad), 0)
            oh0 = (e[0:1, :] == iota_c).astype(jnp.float32)     # (C, ne_pad)
            oh1 = (e[1:2, :] == iota_c).astype(jnp.float32)
            f0 = jnp.dot(m, oh0, preferred_element_type=jnp.float32)  # (E, ne_pad)
            f1 = jnp.dot(m, oh1, preferred_element_type=jnp.float32)
            inter = 1.0 - jnp.sum(f0 * f1, axis=0, keepdims=True)     # (1, ne_pad)
            w = w_ref[0]                                              # (1, ne_pad)
            w_mod = (jax.nn.sigmoid(w * sigm_factor - 0.5 * sigm_factor)
                     - pull_factor)
            inter = jnp.maximum(delta_dist - inter * w_mod, 0.0)
            emask = (lax.broadcasted_iota(jnp.int32, (1, ne_pad), 1)
                     < n_edges).astype(jnp.float32)             # mask padded edges
            edge_acc[...] = (jnp.sum(inter * emask, keepdims=True)
                             * (1.0 / n_edges))

        # Per-pixel [mean | 1/count] gather with ONE MXU matmul (K = C), then an
        # (E+1) x hw_t elementwise hinge -- no (C, hw_t) select / reduce.
        emb = emb_ref[0]                                        # (E+1, hw_t) bf16
        g = jnp.dot(gmat_ref[...], oh_bf,
                    preferred_element_type=jnp.float32)         # (E+1, hw_t)
        dots = jnp.sum(g[:E, :] * emb[:E, :].astype(jnp.float32),
                       axis=0, keepdims=True)                   # (1, hw_t)
        invc_p = g[E:E + 1, :]                                  # (1, hw_t); 0 on pad
        r = jnp.maximum((1.0 - delta_var) - dots, 0.0) * invc_p
        intra_acc[...] += jnp.sum(r)

    # ---- last tile of pass 1: per-batch partial loss -------------------------
    @pl.when(jnp.logical_and(p == 1, t == n_t - 1))
    def _write_out():
        loss_b = alpha * edge_acc[...] + beta * (intra_acc[...] * (1.0 / C))
        out_ref[...] = jnp.broadcast_to(loss_b, out_ref.shape)


def rag_contrastive_loss(embeddings, sp_seg, edges, weights, *,
                         num_superpixels=None,
                         delta_var=DELTA_VAR, delta_dist=DELTA_DIST,
                         alpha=ALPHA, beta=BETA,
                         sigm_factor=SIGM_FACTOR, pull_factor=PULL_FACTOR,
                         pixel_tile=None):
    """embeddings: (B,E,H,W); sp_seg: (B,1,H,W) int; edges: (B,2,Ne) int;
    weights: (B,Ne) float.  Returns the scalar loss (torch forward, chunks=1).

    Pass `num_superpixels` statically to avoid a device->host sync and per-C
    recompiles.
    """
    B, E, H, W = embeddings.shape
    HW = H * W
    Ne = edges.shape[-1]
    if num_superpixels is None:
        # Fallback only: forces a trace-time device sync, like the torch code.
        num_superpixels = int(jax.device_get(jnp.max(sp_seg))) + 1
    C = int(num_superpixels)
    # TODO(synk): torch recomputes C per batch element (max(seg)+1 per sample);
    # this kernel uses one static global C, which only differs when samples
    # have unequal label counts (the per-sample /C scaling then differs).

    vmem_limit, tile_budget, dims = _generation_tuning(B)
    if pixel_tile is None:
        hw_t = _auto_pixel_tile(HW, C, E + 1, tile_budget)
    else:
        hw_t = min(_round_up(HW, 128), _round_up(pixel_tile, 128))
    hw_pad = _round_up(HW, hw_t)
    n_tiles = hw_pad // hw_t
    ne_pad = _round_up(Ne, 128)

    # Single lane-dense staged embedding layout shared by both passes, with a
    # ones ROW so the pixel counts ride the same pass-0 matmul as the sums.
    emb = embeddings.reshape(B, E, HW).astype(jnp.bfloat16)
    emb = jnp.pad(emb, ((0, 0), (0, 0), (0, hw_pad - HW)))
    emb = jnp.concatenate([emb, jnp.ones((B, 1, hw_pad), jnp.bfloat16)], axis=1)

    seg_dtype = jnp.int16 if C < 32768 else jnp.int32
    seg = sp_seg.reshape(B, HW).astype(seg_dtype)
    seg = jnp.pad(seg, ((0, 0), (0, hw_pad - HW)), constant_values=-1)
    seg = seg.reshape(B, 1, hw_pad)

    # Lane-dense edges / weights (edge index on the 128-lane axis, pad = -1).
    edg = jnp.pad(edges.astype(jnp.int32),
                  ((0, 0), (0, 0), (0, ne_pad - Ne)), constant_values=-1)
    wgt = jnp.pad(weights.astype(jnp.float32),
                  ((0, 0), (0, ne_pad - Ne))).reshape(B, 1, ne_pad)

    kernel = functools.partial(
        _rag_contrastive_kernel, n_sp=C, n_edges=Ne,
        delta_var=delta_var, delta_dist=delta_dist, alpha=alpha, beta=beta,
        sigm_factor=sigm_factor, pull_factor=pull_factor)

    out = pl.pallas_call(
        kernel,
        out_shape=jax.ShapeDtypeStruct((B, 1, 128), jnp.float32),
        grid=(B, 2, n_tiles),
        in_specs=[
            pl.BlockSpec((1, E + 1, hw_t), lambda b, p, t: (b, 0, t)),
            pl.BlockSpec((1, 1, hw_t), lambda b, p, t: (b, 0, t)),
            pl.BlockSpec((1, 2, ne_pad), lambda b, p, t: (b, 0, 0)),
            pl.BlockSpec((1, 1, ne_pad), lambda b, p, t: (b, 0, 0)),
        ],
        out_specs=pl.BlockSpec((1, 1, 128), lambda b, p, t: (b, 0, 0)),
        scratch_shapes=[
            pltpu.VMEM((E + 1, C), jnp.float32),    # [sums ; counts] accumulator
            pltpu.VMEM((E + 1, C), jnp.bfloat16),   # [norm. means ; 1/count]
            pltpu.VMEM((1, 1), jnp.float32),        # intra-loss accumulator
            pltpu.VMEM((1, 1), jnp.float32),        # edge (inter) loss
        ],
        compiler_params=pltpu.CompilerParams(
            dimension_semantics=dims,
            vmem_limit_bytes=vmem_limit),
    )(emb, seg, edg, wgt)
    # torch returns loss.mean() of a 1-element accumulator == the summed scalar.
    return jnp.sum(out[:, 0, 0])


def _reference_loss(embeddings, sp_seg, edges, weights):
    """Pure-JAX f32 reference mirroring the torch forward (chunks=1)."""
    B, E, H, W = embeddings.shape
    HW = H * W
    C = int(jnp.max(sp_seg)) + 1
    Ne = edges.shape[-1]
    total = 0.0
    for i in range(B):
        emb = embeddings[i].reshape(E, HW).T
        seg = sp_seg[i].reshape(HW)
        onehot = (seg[:, None] == jnp.arange(C)[None, :]).astype(jnp.float32)
        counts = onehot.sum(0)
        means = (onehot.T @ emb) / counts[:, None]
        means = means / (jnp.linalg.norm(means, axis=1, keepdims=True) + 1e-10)
        dot_p = jnp.sum((onehot @ means) * emb, axis=1)
        npix_p = onehot @ counts
        intra = jnp.sum(jnp.maximum(1.0 - dot_p - DELTA_VAR, 0.0) / npix_p) / C
        f0 = means[edges[i, 0]]
        f1 = means[edges[i, 1]]
        inter = 1.0 - jnp.sum(f0 * f1, axis=1)
        w_mod = jax.nn.sigmoid(weights[i] * SIGM_FACTOR - SIGM_FACTOR / 2.0) - PULL_FACTOR
        inter = jnp.sum(jnp.maximum(DELTA_DIST - inter * w_mod, 0.0)) / Ne
        total = total + ALPHA * inter + BETA * intra
    return total


if __name__ == "__main__":
    key = jax.random.PRNGKey(0)
    B, E, H, W = 2, 8, 16, 16
    C_side = 4
    C = C_side * C_side          # 16 superpixels, all present in each sample
    Ne = 32

    k_emb, k_edge, k_w = jax.random.split(key, 3)
    embeddings = jax.random.normal(k_emb, (B, E, H, W), dtype=jnp.float32)
    embeddings = embeddings / (jnp.linalg.norm(embeddings, axis=1, keepdims=True) + 1e-10)

    rows = jnp.arange(H) // (H // C_side)
    cols = jnp.arange(W) // (W // C_side)
    seg2d = rows[:, None] * C_side + cols[None, :]
    sp_seg = jnp.broadcast_to(seg2d[None, None], (B, 1, H, W)).astype(jnp.int32)

    edges = jax.random.randint(k_edge, (B, 2, Ne), 0, C, dtype=jnp.int32)
    weights = jax.random.uniform(k_w, (B, Ne), dtype=jnp.float32)

    loss = rag_contrastive_loss(embeddings, sp_seg, edges, weights,
                                num_superpixels=C)
    loss = jax.block_until_ready(loss)

    ref = _reference_loss(embeddings, sp_seg, edges, weights)
    # Tolerance accounts for bf16 MXU operands / bf16 1/count (f32 accumulation).
    assert np.allclose(np.asarray(loss), np.asarray(ref), rtol=3e-2, atol=3e-3), (loss, ref)
    print("KERNEL_OK")
</pallas_src>

<mosaic_0001>
module attributes {stable_mosaic.version = 11 : i64} {
  func.func @_rag_contrastive_kernel(%arg0: i32, %arg1: i32, %arg2: i32, %arg3: memref<1x9x256xbf16, #tpu.memory_space<vmem>>, %arg4: memref<1x1x256xi16, #tpu.memory_space<vmem>>, %arg5: memref<1x2x128xi32, #tpu.memory_space<vmem>>, %arg6: memref<1x1x128xf32, #tpu.memory_space<vmem>>, %arg7: memref<1x1x128xf32, #tpu.memory_space<vmem>>, %arg8: memref<9x16xf32, #tpu.memory_space<vmem>>, %arg9: memref<9x16xbf16, #tpu.memory_space<vmem>>, %arg10: memref<1x1xf32, #tpu.memory_space<vmem>>, %arg11: memref<1x1xf32, #tpu.memory_space<vmem>>) attributes {dimension_semantics = [#tpu.dimension_semantics<parallel>, #tpu.dimension_semantics<arbitrary>, #tpu.dimension_semantics<arbitrary>], iteration_bounds = array<i64: 2, 2, 1>, scalar_prefetch = 0 : i64, scratch_operands = 4 : i64, tpu.core_type = #tpu.core_type<tc>, window_params = [{transform_indices = @transform_0, window_bounds = array<i64: 1, 9, 256>}, {transform_indices = @transform_1, window_bounds = array<i64: 1, 1, 256>}, {transform_indices = @transform_2, window_bounds = array<i64: 1, 2, 128>}, {transform_indices = @transform_3, window_bounds = array<i64: 1, 1, 128>}, {transform_indices = @transform_4, window_bounds = array<i64: 1, 1, 128>}]} {
    %c0 = arith.constant 0 : index
    %c0_0 = arith.constant 0 : index
    %c0_1 = arith.constant 0 : index
    %0 = vector.load %arg4[%c0, %c0_0, %c0_1] : memref<1x1x256xi16, #tpu.memory_space<vmem>>, vector<1x1x256xi16>
    %1 = vector.shape_cast %0 : vector<1x1x256xi16> to vector<1x256xi16>
    %2 = arith.extsi %1 : vector<1x256xi16> to vector<1x256xi32>
    %3 = tpu.iota {dimensions = array<i32: 0>} : vector<16x256xi32>
    %4 = vector.broadcast %2 : vector<1x256xi32> to vector<16x256xi32>
    %5 = arith.cmpi eq, %4, %3 : vector<16x256xi32>
    %6 = arith.extui %5 : vector<16x256xi1> to vector<16x256xi32>
    %7 = arith.sitofp %6 : vector<16x256xi32> to vector<16x256xf32>
    %8 = arith.truncf %7 : vector<16x256xf32> to vector<16x256xbf16>
    %c0_i32 = arith.constant 0 : i32
    %9 = arith.cmpi eq, %arg1, %c0_i32 : i32
    %10 = arith.extui %9 : i1 to i32
    %c0_i32_2 = arith.constant 0 : i32
    %11 = arith.cmpi ne, %10, %c0_i32_2 : i32
    scf.if %11 {
      %c0_i32_7 = arith.constant 0 : i32
      %20 = arith.cmpi eq, %arg2, %c0_i32_7 : i32
      %21 = arith.extui %20 : i1 to i32
      %c0_i32_8 = arith.constant 0 : i32
      %22 = arith.cmpi ne, %21, %c0_i32_8 : i32
      scf.if %22 {
        %cst_16 = arith.constant 0.000000e+00 : f32
        %29 = vector.broadcast %cst_16 : f32 to vector<9x16xf32>
        %c0_17 = arith.constant 0 : index
        %c0_18 = arith.constant 0 : index
        %30 = vector.load %arg8[%c0_17, %c0_18] : memref<9x16xf32, #tpu.memory_space<vmem>>, vector<9x16xf32>
        tpu.vector_store %arg8[%c0_17, %c0_18], %29 {strides = array<i32>} : memref<9x16xf32, #tpu.memory_space<vmem>>, vector<9x16xf32>,
      } else {
      }
      %c0_9 = arith.constant 0 : index
      %c0_10 = arith.constant 0 : index
      %c0_11 = arith.constant 0 : index
      %23 = vector.load %arg3[%c0_9, %c0_10, %c0_11] : memref<1x9x256xbf16, #tpu.memory_space<vmem>>, vector<1x9x256xbf16>
      %24 = vector.shape_cast %23 : vector<1x9x256xbf16> to vector<9x256xbf16>
      %c0_12 = arith.constant 0 : index
      %c0_13 = arith.constant 0 : index
      %25 = vector.load %arg8[%c0_12, %c0_13] : memref<9x16xf32, #tpu.memory_space<vmem>>, vector<9x16xf32>
      %cst = arith.constant dense<0.000000e+00> : vector<9x16xf32>
      %26 = tpu.matmul %24, %8, %cst {dimension_numbers = #tpu.dot_dimension_numbers<[1], [1], [0], [0], [0, 0, 1, 0], [], []>} : vector<9x256xbf16>, vector<16x256xbf16>, vector<9x16xf32> -> vector<9x16xf32>
      %27 = arith.addf %25, %26 : vector<9x16xf32>
      %c0_14 = arith.constant 0 : index
      %c0_15 = arith.constant 0 : index
      %28 = vector.load %arg8[%c0_14, %c0_15] : memref<9x16xf32, #tpu.memory_space<vmem>>, vector<9x16xf32>
      tpu.vector_store %arg8[%c0_14, %c0_15], %27 {strides = array<i32>} : memref<9x16xf32, #tpu.memory_space<vmem>>, vector<9x16xf32>,
    } else {
    }
    %c1_i32 = arith.constant 1 : i32
    %12 = arith.cmpi eq, %arg1, %c1_i32 : i32
    %13 = arith.extui %12 : i1 to i32
    %c0_i32_3 = arith.constant 0 : i32
    %14 = arith.cmpi ne, %13, %c0_i32_3 : i32
    scf.if %14 {
      %c0_i32_7 = arith.constant 0 : i32
      %20 = arith.cmpi eq, %arg2, %c0_i32_7 : i32
      %21 = arith.extui %20 : i1 to i32
      %c0_i32_8 = arith.constant 0 : i32
      %22 = arith.cmpi ne, %21, %c0_i32_8 : i32
      scf.if %22 {
        %c0_22 = arith.constant 0 : index
        %c0_23 = arith.constant 0 : index
        %47 = vector.load %arg8[%c0_22, %c0_23] : memref<9x16xf32, #tpu.memory_space<vmem>>, vector<9x16xf32>
        %48 = vector.extract_strided_slice %47 {offsets = [8, 0], sizes = [1, 16], strides = [1, 1]} : vector<9x16xf32> to vector<1x16xf32>
        %cst_24 = arith.constant 1.000000e+00 : f32
        %49 = vector.broadcast %cst_24 : f32 to vector<1x16xf32>
        %50 = arith.maximumf %48, %49 : vector<1x16xf32>
        %51 = tpu.reciprocal %50 {approx = true} : vector<1x16xf32> -> vector<1x16xf32>
        %52 = vector.extract_strided_slice %47 {offsets = [0, 0], sizes = [8, 16], strides = [1, 1]} : vector<9x16xf32> to vector<8x16xf32>
        %53 = arith.mulf %52, %52 : vector<8x16xf32>
        %cst_25 = arith.constant dense<0.000000e+00> : vector<16xf32>
        %54 = vector.multi_reduction <add>, %53, %cst_25 [0] : vector<8x16xf32> to vector<16xf32>
        %55 = vector.shape_cast %54 : vector<16xf32> to vector<1x16xf32>
        %cst_26 = arith.constant 9.99999968E-21 : f32
        %56 = vector.broadcast %cst_26 : f32 to vector<1x16xf32>
        %57 = arith.addf %55, %56 : vector<1x16xf32>
        %58 = math.rsqrt %57 : vector<1x16xf32>
        %59 = vector.broadcast %58 : vector<1x16xf32> to vector<8x16xf32>
        %60 = arith.mulf %52, %59 : vector<8x16xf32>
        %61 = arith.truncf %60 : vector<8x16xf32> to vector<8x16xbf16>
        %c0_27 = arith.constant 0 : index
        %c0_28 = arith.constant 0 : index
        %62 = vector.load %arg9[%c0_27, %c0_28] : memref<9x16xbf16, #tpu.memory_space<vmem>>, vector<8x16xbf16>
        tpu.vector_store %arg9[%c0_27, %c0_28], %61 {strides = array<i32>} : memref<9x16xbf16, #tpu.memory_space<vmem>>, vector<8x16xbf16>,
        %63 = arith.truncf %51 : vector<1x16xf32> to vector<1x16xbf16>
        %c8 = arith.constant 8 : index
        %c0_29 = arith.constant 0 : index
        %64 = vector.load %arg9[%c8, %c0_29] : memref<9x16xbf16, #tpu.memory_space<vmem>>, vector<1x16xbf16>
        tpu.vector_store %arg9[%c8, %c0_29], %63 {strides = array<i32>} : memref<9x16xbf16, #tpu.memory_space<vmem>>, vector<1x16xbf16>,
        %cst_30 = arith.constant 0.000000e+00 : f32
        %65 = vector.broadcast %cst_30 : f32 to vector<1x1xf32>
        %c0_31 = arith.constant 0 : index
        %c0_32 = arith.constant 0 : index
        %66 = vector.load %arg10[%c0_31, %c0_32] : memref<1x1xf32, #tpu.memory_space<vmem>>, vector<1x1xf32>
        tpu.vector_store %arg10[%c0_31, %c0_32], %65 {strides = array<i32>} : memref<1x1xf32, #tpu.memory_space<vmem>>, vector<1x1xf32>,
        %c0_33 = arith.constant 0 : index
        %c0_34 = arith.constant 0 : index
        %c0_35 = arith.constant 0 : index
        %67 = vector.load %arg5[%c0_33, %c0_34, %c0_35] : memref<1x2x128xi32, #tpu.memory_space<vmem>>, vector<1x2x128xi32>
        %68 = vector.shape_cast %67 : vector<1x2x128xi32> to vector<2x128xi32>
        %69 = tpu.iota {dimensions = array<i32: 0>} : vector<16x128xi32>
        %70 = vector.extract_strided_slice %68 {offsets = [0, 0], sizes = [1, 128], strides = [1, 1]} : vector<2x128xi32> to vector<1x128xi32>
        %71 = vector.broadcast %70 : vector<1x128xi32> to vector<16x128xi32>
        %72 = arith.cmpi eq, %71, %69 : vector<16x128xi32>
        %73 = arith.extui %72 : vector<16x128xi1> to vector<16x128xi32>
        %74 = arith.sitofp %73 : vector<16x128xi32> to vector<16x128xf32>
        %75 = vector.extract_strided_slice %68 {offsets = [1, 0], sizes = [1, 128], strides = [1, 1]} : vector<2x128xi32> to vector<1x128xi32>
        %76 = vector.broadcast %75 : vector<1x128xi32> to vector<16x128xi32>
        %77 = arith.cmpi eq, %76, %69 : vector<16x128xi32>
        %78 = arith.extui %77 : vector<16x128xi1> to vector<16x128xi32>
        %79 = arith.sitofp %78 : vector<16x128xi32> to vector<16x128xf32>
        %cst_36 = arith.constant dense<0.000000e+00> : vector<8x128xf32>
        %80 = tpu.matmul %60, %74, %cst_36 {dimension_numbers = #tpu.dot_dimension_numbers<[1], [0], [0], [1], [0, 0, 1, 1], [], []>} : vector<8x16xf32>, vector<16x128xf32>, vector<8x128xf32> -> vector<8x128xf32>
        %cst_37 = arith.constant dense<0.000000e+00> : vector<8x128xf32>
        %81 = tpu.matmul %60, %79, %cst_37 {dimension_numbers = #tpu.dot_dimension_numbers<[1], [0], [0], [1], [0, 0, 1, 1], [], []>} : vector<8x16xf32>, vector<16x128xf32>, vector<8x128xf32> -> vector<8x128xf32>
        %82 = arith.mulf %80, %81 : vector<8x128xf32>
        %cst_38 = arith.constant dense<0.000000e+00> : vector<128xf32>
        %83 = vector.multi_reduction <add>, %82, %cst_38 [0] : vector<8x128xf32> to vector<128xf32>
        %84 = vector.shape_cast %83 : vector<128xf32> to vector<1x128xf32>
        %cst_39 = arith.constant 1.000000e+00 : f32
        %85 = vector.broadcast %cst_39 : f32 to vector<1x128xf32>
        %86 = arith.subf %85, %84 : vector<1x128xf32>
        %c0_40 = arith.constant 0 : index
        %c0_41 = arith.constant 0 : index
        %c0_42 = arith.constant 0 : index
        %87 = vector.load %arg6[%c0_40, %c0_41, %c0_42] : memref<1x1x128xf32, #tpu.memory_space<vmem>>, vector<1x1x128xf32>
        %88 = vector.shape_cast %87 : vector<1x1x128xf32> to vector<1x128xf32>
        %cst_43 = arith.constant 5.000000e+00 : f32
        %89 = vector.broadcast %cst_43 : f32 to vector<1x128xf32>
        %90 = arith.mulf %88, %89 : vector<1x128xf32>
        %cst_44 = arith.constant 2.500000e+00 : f32
        %91 = vector.broadcast %cst_44 : f32 to vector<1x128xf32>
        %92 = arith.subf %90, %91 : vector<1x128xf32>
        %93 = arith.negf %92 : vector<1x128xf32>
        %94 = math.exp %93 : vector<1x128xf32>
        %cst_45 = arith.constant 1.000000e+00 : f32
        %95 = vector.broadcast %cst_45 : f32 to vector<1x128xf32>
        %96 = arith.addf %95, %94 : vector<1x128xf32>
        %97 = arith.divf %95, %96 : vector<1x128xf32>
        %cst_46 = arith.constant 1.000000e-01 : f32
        %98 = vector.broadcast %cst_46 : f32 to vector<1x128xf32>
        %99 = arith.subf %97, %98 : vector<1x128xf32>
        %100 = arith.mulf %86, %99 : vector<1x128xf32>
        %cst_47 = arith.constant 3.000000e-01 : f32
        %101 = vector.broadcast %cst_47 : f32 to vector<1x128xf32>
        %102 = arith.subf %101, %100 : vector<1x128xf32>
        %cst_48 = arith.constant 0.000000e+00 : f32
        %103 = vector.broadcast %cst_48 : f32 to vector<1x128xf32>
        %104 = arith.maximumf %102, %103 : vector<1x128xf32>
        %105 = tpu.iota {dimensions = array<i32: 1>} : vector<1x128xi32>
        %c32_i32 = arith.constant 32 : i32
        %106 = vector.broadcast %c32_i32 : i32 to vector<1x128xi32>
        %107 = arith.cmpi slt, %105, %106 : vector<1x128xi32>
        %108 = arith.extui %107 : vector<1x128xi1> to vector<1x128xi32>
        %109 = arith.sitofp %108 : vector<1x128xi32> to vector<1x128xf32>
        %110 = arith.mulf %104, %109 : vector<1x128xf32>
        %111 = vector.shape_cast %110 : vector<1x128xf32> to vector<1x1x128xf32>
        %cst_49 = arith.constant dense<0.000000e+00> : vector<1xf32>
        %112 = vector.multi_reduction <add>, %111, %cst_49 [1, 2] : vector<1x1x128xf32> to vector<1xf32>
        %113 = vector.shape_cast %112 : vector<1xf32> to vector<1x1x1xf32>
        %114 = vector.extract %113[0, 0, 0] : f32 from vector<1x1x1xf32>
        %115 = vector.broadcast %114 : f32 to vector<1x1xf32>
        %cst_50 = arith.constant 3.125000e-02 : f32
        %116 = vector.broadcast %cst_50 : f32 to vector<1x1xf32>
        %117 = arith.mulf %115, %116 : vector<1x1xf32>
        %c0_51 = arith.constant 0 : index
        %c0_52 = arith.constant 0 : index
        %118 = vector.load %arg11[%c0_51, %c0_52] : memref<1x1xf32, #tpu.memory_space<vmem>>, vector<1x1xf32>
        tpu.vector_store %arg11[%c0_51, %c0_52], %117 {strides = array<i32>} : memref<1x1xf32, #tpu.memory_space<vmem>>, vector<1x1xf32>,
      } else {
      }
      %c0_9 = arith.constant 0 : index
      %c0_10 = arith.constant 0 : index
      %c0_11 = arith.constant 0 : index
      %23 = vector.load %arg3[%c0_9, %c0_10, %c0_11] : memref<1x9x256xbf16, #tpu.memory_space<vmem>>, vector<1x9x256xbf16>
      %24 = vector.shape_cast %23 : vector<1x9x256xbf16> to vector<9x256xbf16>
      %c0_12 = arith.constant 0 : index
      %c0_13 = arith.constant 0 : index
      %25 = vector.load %arg9[%c0_12, %c0_13] : memref<9x16xbf16, #tpu.memory_space<vmem>>, vector<9x16xbf16>
      %cst = arith.constant dense<0.000000e+00> : vector<9x256xf32>
      %26 = tpu.matmul %25, %8, %cst {dimension_numbers = #tpu.dot_dimension_numbers<[1], [0], [0], [1], [0, 0, 1, 1], [], []>} : vector<9x16xbf16>, vector<16x256xbf16>, vector<9x256xf32> -> vector<9x256xf32>
      %27 = vector.extract_strided_slice %26 {offsets = [0, 0], sizes = [8, 256], strides = [1, 1]} : vector<9x256xf32> to vector<8x256xf32>
      %28 = vector.extract_strided_slice %24 {offsets = [0, 0], sizes = [8, 256], strides = [1, 1]} : vector<9x256xbf16> to vector<8x256xbf16>
      %29 = arith.extf %28 : vector<8x256xbf16> to vector<8x256xf32>
      %30 = arith.mulf %27, %29 : vector<8x256xf32>
      %cst_14 = arith.constant dense<0.000000e+00> : vector<256xf32>
      %31 = vector.multi_reduction <add>, %30, %cst_14 [0] : vector<8x256xf32> to vector<256xf32>
      %32 = vector.shape_cast %31 : vector<256xf32> to vector<1x256xf32>
      %33 = vector.extract_strided_slice %26 {offsets = [8, 0], sizes = [1, 256], strides = [1, 1]} : vector<9x256xf32> to vector<1x256xf32>
      %cst_15 = arith.constant 0.899999976 : f32
      %34 = vector.broadcast %cst_15 : f32 to vector<1x256xf32>
      %35 = arith.subf %34, %32 : vector<1x256xf32>
      %cst_16 = arith.constant 0.000000e+00 : f32
      %36 = vector.broadcast %cst_16 : f32 to vector<1x256xf32>
      %37 = arith.maximumf %35, %36 : vector<1x256xf32>
      %38 = arith.mulf %37, %33 : vector<1x256xf32>
      %c0_17 = arith.constant 0 : index
      %c0_18 = arith.constant 0 : index
      %39 = vector.load %arg10[%c0_17, %c0_18] : memref<1x1xf32, #tpu.memory_space<vmem>>, vector<1x1xf32>
      %40 = vector.shape_cast %38 : vector<1x256xf32> to vector<1x1x256xf32>
      %cst_19 = arith.constant dense<0.000000e+00> : vector<1xf32>
      %41 = vector.multi_reduction <add>, %40, %cst_19 [1, 2] : vector<1x1x256xf32> to vector<1xf32>
      %42 = vector.shape_cast %41 : vector<1xf32> to vector<1x1x1xf32>
      %43 = vector.extract %42[0, 0, 0] : f32 from vector<1x1x1xf32>
      %44 = vector.broadcast %43 : f32 to vector<1x1xf32>
      %45 = arith.addf %39, %44 : vector<1x1xf32>
      %c0_20 = arith.constant 0 : index
      %c0_21 = arith.constant 0 : index
      %46 = vector.load %arg10[%c0_20, %c0_21] : memref<1x1xf32, #tpu.memory_space<vmem>>, vector<1x1xf32>
      tpu.vector_store %arg10[%c0_20, %c0_21], %45 {strides = array<i32>} : memref<1x1xf32, #tpu.memory_space<vmem>>, vector<1x1xf32>,
    } else {
    }
    %c1_i32_4 = arith.constant 1 : i32
    %15 = arith.cmpi eq, %arg1, %c1_i32_4 : i32
    %c0_i32_5 = arith.constant 0 : i32
    %16 = arith.cmpi eq, %arg2, %c0_i32_5 : i32
    %17 = arith.andi %15, %16 : i1
    %18 = arith.extui %17 : i1 to i32
    %c0_i32_6 = arith.constant 0 : i32
    %19 = arith.cmpi ne, %18, %c0_i32_6 : i32
    scf.if %19 {
      %c0_7 = arith.constant 0 : index
      %c0_8 = arith.constant 0 : index
      %20 = vector.load %arg11[%c0_7, %c0_8] : memref<1x1xf32, #tpu.memory_space<vmem>>, vector<1x1xf32>
      %cst = arith.constant 1.000000e+00 : f32
      %21 = vector.broadcast %cst : f32 to vector<1x1xf32>
      %22 = arith.mulf %21, %20 : vector<1x1xf32>
      %c0_9 = arith.constant 0 : index
      %c0_10 = arith.constant 0 : index
      %23 = vector.load %arg10[%c0_9, %c0_10] : memref<1x1xf32, #tpu.memory_space<vmem>>, vector<1x1xf32>
      %cst_11 = arith.constant 6.250000e-02 : f32
      %24 = vector.broadcast %cst_11 : f32 to vector<1x1xf32>
      %25 = arith.mulf %23, %24 : vector<1x1xf32>
      %cst_12 = arith.constant 1.000000e+00 : f32
      %26 = vector.broadcast %cst_12 : f32 to vector<1x1xf32>
      %27 = arith.mulf %26, %25 : vector<1x1xf32>
      %28 = arith.addf %22, %27 : vector<1x1xf32>
      %29 = vector.shape_cast %28 : vector<1x1xf32> to vector<1x1x1xf32>
      %30 = vector.broadcast %29 : vector<1x1x1xf32> to vector<1x1x128xf32>
      %c0_13 = arith.constant 0 : index
      %c0_14 = arith.constant 0 : index
      %c0_15 = arith.constant 0 : index
      %31 = vector.load %arg7[%c0_13, %c0_14, %c0_15] : memref<1x1x128xf32, #tpu.memory_space<vmem>>, vector<1x1x128xf32>
      tpu.vector_store %arg7[%c0_13, %c0_14, %c0_15], %30 {strides = array<i32>} : memref<1x1x128xf32, #tpu.memory_space<vmem>>, vector<1x1x128xf32>,
    } else {
    }
    return
  }
  func.func @transform_0(%arg0: i32, %arg1: i32, %arg2: i32) -> (i32, i32, i32) {
    %c0_i32 = arith.constant 0 : i32
    %c0_i32_0 = arith.constant 0 : i32
    return %arg0, %c0_i32, %arg2 : i32, i32, i32
  }
  func.func @transform_1(%arg0: i32, %arg1: i32, %arg2: i32) -> (i32, i32, i32) {
    %c0_i32 = arith.constant 0 : i32
    %c0_i32_0 = arith.constant 0 : i32
    return %arg0, %c0_i32, %arg2 : i32, i32, i32
  }
  func.func @transform_2(%arg0: i32, %arg1: i32, %arg2: i32) -> (i32, i32, i32) {
    %c0_i32 = arith.constant 0 : i32
    %c0_i32_0 = arith.constant 0 : i32
    %c0_i32_1 = arith.constant 0 : i32
    return %arg0, %c0_i32, %c0_i32_0 : i32, i32, i32
  }
  func.func @transform_3(%arg0: i32, %arg1: i32, %arg2: i32) -> (i32, i32, i32) {
    %c0_i32 = arith.constant 0 : i32
    %c0_i32_0 = arith.constant 0 : i32
    %c0_i32_1 = arith.constant 0 : i32
    return %arg0, %c0_i32, %c0_i32_0 : i32, i32, i32
  }
  func.func @transform_4(%arg0: i32, %arg1: i32, %arg2: i32) -> (i32, i32, i32) {
    %c0_i32 = arith.constant 0 : i32
    %c0_i32_0 = arith.constant 0 : i32
    %c0_i32_1 = arith.constant 0 : i32
    return %arg0, %c0_i32, %c0_i32_0 : i32, i32, i32
  }
}

</mosaic_0001>

<llo_original>
// kernel: tpu_custom_call.1
$region0: #{tpu_custom_call.1}
  #allocation0 [shape = 'u32[]', space=smem, size = 0x4, offset = 0x4, fixed_abs, tag = 'smem constant byte address 0x4 - core index']
  #allocation1 [shape = 'u32[144,128]{1,0:T(1,128)}', space=vmem, size = 0x12000, scoped, tag = 'internal scratch']
  #allocation2 [shape = 'f32[9,16]{1,0:T(8,128)}', space=vmem, size = 0x2000, scoped, tag = 'scratch operand']
  #allocation3 [shape = 'bf16[9,16]{1,0:T(8,128)(2,1)}', space=vmem, size = 0x1000, scoped, tag = 'scratch operand']
  #allocation4 [shape = 'f32[1,1]{1,0:T(1,128)}', space=vmem, size = 0x200, scoped, tag = 'scratch operand']
  #allocation5 [shape = 'f32[1,1]{1,0:T(1,128)}', space=vmem, size = 0x200, scoped, tag = 'scratch operand']
  %s0 = inlined_call_operand.vmem [shape: bf16[2,9,256], index: 0, kind: input, shape index: {}]
  %s1 = inlined_call_operand.vmem [shape: s16[2,1,256], index: 1, kind: input, shape index: {}]
  %s2 = inlined_call_operand.vmem [shape: s32[2,2,128], index: 2, kind: input, shape index: {}]
  %s3 = inlined_call_operand.vmem [shape: f32[2,1,128], index: 3, kind: input, shape index: {}]
  %s4 = inlined_call_operand.hbm [shape: f32[2,1,128], index: 4, kind: output, shape index: {}]
  %s5 = sld [smem:[#allocation0]]
  $region69: #{tpu_custom_call.1} parent=0
    _
  %s7 = ssub.s32 1, %s5
  %s8 = scalar_select 0, %s7, %s5
  $region1: #{tpu_custom_call.1} parent=0
    #allocation6 [shape = 'u8[1024]{0}', space=vmem, size = 0x400, scoped, tag = 'output window, operand 0']
    #allocation7 [shape = 's32[2]{0}', space=sflag, size = 0x8, scoped, tag = 'scoped memory for tpu_custom_call.1']
    %9 = vsyncpa [#allocation7], 0
    %s10 = scalar_lea.sflag [#allocation7], 1
    %11 = vsyncpa %s10, 0
    loop: start=0, step=1, limit=6
    $region2: #{tpu_custom_call.1} parent=1 // loop_pre_header
      _
    $region3: #{tpu_custom_call.1} parent=1 // loop_header
      %s13 = sphi 0, %s17
      %p14 = scmp.ge.s32.totalorder %s13, 6
      %s20 = sphi 0, %s39
      %s21 = sphi 0, %s35
      %s22 = sphi 0, %s31
      %s23 = sphi 0, %s20
      %s24 = sphi 0, %s21
      %s25 = sphi 0, %s22
      %s26 = sphi 0, %s23
      %s27 = sphi 0, %s24
      %s28 = sphi 0, %s25
      %s44 = sphi 0, %s46
      %s47 = sphi 0, %s44
      %s48 = sphi 0, %s47
      %s64 = sphi 0, %s48
      %s72 = sphi 0, %s74
      %s75 = sphi 0, %s72
      %s76 = sphi 0, %s75
      %s92 = sphi 0, %s76
      %s98 = sphi 0, %s100
      %s101 = sphi 0, %s98
      %s102 = sphi 0, %s101
      %s118 = sphi 0, %s102
      %s124 = sphi 0, %s126
      %s127 = sphi 0, %s124
      %s128 = sphi 0, %s127
      %s144 = sphi 0, %s128
      %s150 = sphi 0, %s152
      %s153 = sphi 0, %s150
      %s154 = sphi 0, %s153
      %s170 = sphi 0, %s154
    $region4: #{tpu_custom_call.1} parent=1 // loop_header_branch
      %16 = sbr.rel (%p14) target = $region8
    $region5: #{tpu_custom_call.1} parent=1 // loop_body
      %s18 = ssub.s32 %s13, 1
      %s19 = ssub.s32 %s13, 2
      %s29 = sadd.s32 1, %s22
      %p30 = scmp.ge.s32.totalorder %s29, 1
      %s31 = scalar_select %p30, 0, %s29
      %s32 = sadd.s32 1, %s21
      %s33 = scalar_select %p30, %s32, %s21
      %p34 = scmp.ge.s32.totalorder %s33, 2
      %s35 = scalar_select %p34, 0, %s33
      %s36 = sadd.s32 1, %s20
      %s37 = scalar_select %p34, %s36, %s20
      %p38 = scmp.ge.s32.totalorder %s37, 2
      %s39 = scalar_select %p38, 0, %s37
      %s40 = ssub.s32 %s20, %s39
      %s41 = ssub.s32 %s22, %s31
      %s42 = sor.u32 %s40, %s41
      %p43 = scmp.eq.s32.totalorder %s42, 0
      %s45 = sadd.s32 %s44, 1
      %s46 = scalar_select %p43, %s44, %s45
      %p49 = pneg %p43
      %p50 = scmp.eq.s32.totalorder %s13, 3
      %p51 = por %p49, %p50
      %p52 = scmp.ne.s32.totalorder %s44, %s47
      %p53 = scmp.eq.s32.totalorder %s13, 0
      %p54 = por %p52, %p53
      %p55 = scmp.ne.s32.totalorder %s44, %s47
      %p56 = scmp.eq.s32.totalorder %s18, 3
      %p57 = por %p55, %p56
      %p58 = scmp.ne.s32.totalorder %s47, %s48
      %p59 = scmp.eq.s32.totalorder %s18, 0
      %p60 = por %p58, %p59
      %p61 = scmp.ne.s32.totalorder %s47, %s48
      %p62 = scmp.eq.s32.totalorder %s19, 3
      %p63 = por %p61, %p62
      %p65 = scmp.ne.s32.totalorder %s48, %s64
      %p66 = scmp.eq.s32.totalorder %s19, 0
      %p67 = por %p65, %p66
      %s68 = ssub.s32 %s20, %s39
      %s69 = ssub.s32 %s22, %s31
      %s70 = sor.u32 %s68, %s69
      %p71 = scmp.eq.s32.totalorder %s70, 0
      %s73 = sadd.s32 %s72, 1
      %s74 = scalar_select %p71, %s72, %s73
      %p77 = pneg %p71
      %p78 = scmp.eq.s32.totalorder %s13, 3
      %p79 = por %p77, %p78
      %p80 = scmp.ne.s32.totalorder %s72, %s75
      %p81 = scmp.eq.s32.totalorder %s13, 0
      %p82 = por %p80, %p81
      %p83 = scmp.ne.s32.totalorder %s72, %s75
      %p84 = scmp.eq.s32.totalorder %s18, 3
      %p85 = por %p83, %p84
      %p86 = scmp.ne.s32.totalorder %s75, %s76
      %p87 = scmp.eq.s32.totalorder %s18, 0
      %p88 = por %p86, %p87
      %p89 = scmp.ne.s32.totalorder %s75, %s76
      %p90 = scmp.eq.s32.totalorder %s19, 3
      %p91 = por %p89, %p90
      %p93 = scmp.ne.s32.totalorder %s76, %s92
      %p94 = scmp.eq.s32.totalorder %s19, 0
      %p95 = por %p93, %p94
      %s96 = ssub.s32 %s20, %s39
      %p97 = scmp.eq.s32.totalorder %s96, 0
      %s99 = sadd.s32 %s98, 1
      %s100 = scalar_select %p97, %s98, %s99
      %p103 = pneg %p97
      %p104 = scmp.eq.s32.totalorder %s13, 3
      %p105 = por %p103, %p104
      %p106 = scmp.ne.s32.totalorder %s98, %s101
      %p107 = scmp.eq.s32.totalorder %s13, 0
      %p108 = por %p106, %p107
      %p109 = scmp.ne.s32.totalorder %s98, %s101
      %p110 = scmp.eq.s32.totalorder %s18, 3
      %p111 = por %p109, %p110
      %p112 = scmp.ne.s32.totalorder %s101, %s102
      %p113 = scmp.eq.s32.totalorder %s18, 0
      %p114 = por %p112, %p113
      %p115 = scmp.ne.s32.totalorder %s101, %s102
      %p116 = scmp.eq.s32.totalorder %s19, 3
      %p117 = por %p115, %p116
      %p119 = scmp.ne.s32.totalorder %s102, %s118
      %p120 = scmp.eq.s32.totalorder %s19, 0
      %p121 = por %p119, %p120
      %s122 = ssub.s32 %s20, %s39
      %p123 = scmp.eq.s32.totalorder %s122, 0
      %s125 = sadd.s32 %s124, 1
      %s126 = scalar_select %p123, %s124, %s125
      %p129 = pneg %p123
      %p130 = scmp.eq.s32.totalorder %s13, 3
      %p131 = por %p129, %p130
      %p132 = scmp.ne.s32.totalorder %s124, %s127
      %p133 = scmp.eq.s32.totalorder %s13, 0
      %p134 = por %p132, %p133
      %p135 = scmp.ne.s32.totalorder %s124, %s127
      %p136 = scmp.eq.s32.totalorder %s18, 3
      %p137 = por %p135, %p136
      %p138 = scmp.ne.s32.totalorder %s127, %s128
      %p139 = scmp.eq.s32.totalorder %s18, 0
      %p140 = por %p138, %p139
      %p141 = scmp.ne.s32.totalorder %s127, %s128
      %p142 = scmp.eq.s32.totalorder %s19, 3
      %p143 = por %p141, %p142
      %p145 = scmp.ne.s32.totalorder %s128, %s144
      %p146 = scmp.eq.s32.totalorder %s19, 0
      %p147 = por %p145, %p146
      %s148 = ssub.s32 %s20, %s39
      %p149 = scmp.eq.s32.totalorder %s148, 0
      %s151 = sadd.s32 %s150, 1
      %s152 = scalar_select %p149, %s150, %s151
      %p155 = pneg %p149
      %p156 = scmp.eq.s32.totalorder %s13, 3
      %p157 = por %p155, %p156
      %p158 = scmp.ne.s32.totalorder %s150, %s153
      %p159 = scmp.eq.s32.totalorder %s13, 0
      %p160 = por %p158, %p159
      %p161 = scmp.ne.s32.totalorder %s150, %s153
      %p162 = scmp.eq.s32.totalorder %s18, 3
      %p163 = por %p161, %p162
      %p164 = scmp.ne.s32.totalorder %s153, %s154
      %p165 = scmp.eq.s32.totalorder %s18, 0
      %p166 = por %p164, %p165
      %p167 = scmp.ne.s32.totalorder %s153, %s154
      %p168 = scmp.eq.s32.totalorder %s19, 3
      %p169 = por %p167, %p168
      %p171 = scmp.ne.s32.totalorder %s154, %s170
      %p172 = scmp.eq.s32.totalorder %s19, 0
      %p173 = por %p171, %p172
      %p174 = scmp.le.s32.totalorder 1, %s13
      %p175 = scmp.lt.s32.totalorder %s13, 5
      %p176 = pnand %p174, %p175
      %p177 = pneg %p176
      // Predicated region
      $region9: #{tpu_custom_call.1} parent=5 // pred_check
        _
      $region10: #{tpu_custom_call.1} parent=5 // pred_check_branch
        %179 = sbr.rel (%p176) target = $region12
      $region11: #{tpu_custom_call.1} parent=5 // pred_region
        %s180 = ssub.s32 %s13, 1
      $region12: #{tpu_custom_call.1} parent=5 // pred_fallthru
        _
      %p181 = scmp.lt.s32.totalorder %s13, 4
      // Predicated region
      $region13: #{tpu_custom_call.1} parent=5 // pred_check
        %p182 = pneg %p181
      $region14: #{tpu_custom_call.1} parent=5 // pred_check_branch
        %184 = sbr.rel (%p182) target = $region16
      $region15: #{tpu_custom_call.1} parent=5 // pred_region
        // Predicated region
        $region17: #{tpu_custom_call.1} parent=15 // pred_check
          %p185 = pneg %p54
        $region18: #{tpu_custom_call.1} parent=15 // pred_check_branch
          %187 = sbr.rel (%p185) target = $region20
        $region19: #{tpu_custom_call.1} parent=15 // pred_region
          %s188 = smul.u32 2, %s22
          %p189 = scmp.lt.s32.totalorder %s20, 1
          %s190 = scalar_select %p189, %s20, 1
          %p191 = scmp.lt.s32.totalorder %s188, 1
          %s192 = scalar_select %p191, %s188, 1
          %s193 = smul.addr %s190, 4
          %s194 = sadd.s32 %s192, %s193
          %s195 = smul.addr %s194, 4
          %s196 = scalar_lea.vmem %s0, %s195
          %s197 = smul.u32 2, %s22
        $region20: #{tpu_custom_call.1} parent=15 // pred_fallthru
          _
        // Predicated region
        $region21: #{tpu_custom_call.1} parent=15 // pred_check
          %p198 = pneg %p82
        $region22: #{tpu_custom_call.1} parent=15 // pred_check_branch
          %200 = sbr.rel (%p198) target = $region24
        $region23: #{tpu_custom_call.1} parent=15 // pred_region
          %s201 = smul.u32 2, %s22
          %p202 = scmp.lt.s32.totalorder %s20, 1
          %s203 = scalar_select %p202, %s20, 1
          %p204 = scmp.lt.s32.totalorder %s201, 1
          %s205 = scalar_select %p204, %s201, 1
          %s206 = smul.addr %s203, 2
          %s207 = sadd.s32 %s205, %s206
          %s208 = scalar_lea.vmem %s1, %s207
          %s209 = smul.u32 2, %s22
        $region24: #{tpu_custom_call.1} parent=15 // pred_fallthru
          _
        // Predicated region
        $region25: #{tpu_custom_call.1} parent=15 // pred_check
          %p210 = pneg %p108
        $region26: #{tpu_custom_call.1} parent=15 // pred_check_branch
          %212 = sbr.rel (%p210) target = $region28
        $region27: #{tpu_custom_call.1} parent=15 // pred_region
          %p213 = scmp.lt.s32.totalorder %s20, 1
          %s214 = scalar_select %p213, %s20, 1
          %s215 = smul.addr %s214, 2
          %s216 = scalar_lea.vmem %s2, %s215
        $region28: #{tpu_custom_call.1} parent=15 // pred_fallthru
          _
        // Predicated region
        $region29: #{tpu_custom_call.1} parent=15 // pred_check
          %p217 = pneg %p134
        $region30: #{tpu_custom_call.1} parent=15 // pred_check_branch
          %219 = sbr.rel (%p217) target = $region32
        $region31: #{tpu_custom_call.1} parent=15 // pred_region
          %p220 = scmp.lt.s32.totalorder %s20, 1
          %s221 = scalar_select %p220, %s20, 1
          %s222 = scalar_lea.vmem %s3, %s221
        $region32: #{tpu_custom_call.1} parent=15 // pred_fallthru
          _
      $region16: #{tpu_custom_call.1} parent=5 // pred_fallthru
        _
      %p223 = scmp.le.s32.totalorder 1, %s13
      %p224 = scmp.lt.s32.totalorder %s13, 5
      %p225 = pnand %p223, %p224
      %p226 = pneg %p225
      // Predicated region
      $region33: #{tpu_custom_call.1} parent=5 // pred_check
        _
      $region34: #{tpu_custom_call.1} parent=5 // pred_check_branch
        %228 = sbr.rel (%p225) target = $region36
      $region35: #{tpu_custom_call.1} parent=5 // pred_region
        %s229 = ssub.s32 %s13, 1
        %s230 = smul.u32 2, %s25
        %p231 = scmp.lt.s32.totalorder %s23, 1
        %s232 = scalar_select %p231, %s23, 1
        %p233 = scmp.lt.s32.totalorder %s230, 1
        %s234 = scalar_select %p233, %s230, 1
        %s235 = smul.addr %s232, 4
        %s236 = sadd.s32 %s234, %s235
        %s237 = smul.addr %s236, 4
        %s238 = scalar_lea.vmem %s0, %s237
        %p239 = pneg %p60
        %p240 = pneg %p57
        %s241 = smul.u32 2, %s25
        %p242 = scmp.lt.s32.totalorder %s23, 1
        %s243 = scalar_select %p242, %s23, 1
        %p244 = scmp.lt.s32.totalorder %s241, 1
        %s245 = scalar_select %p244, %s241, 1
        %s246 = smul.addr %s243, 2
        %s247 = sadd.s32 %s245, %s246
        %s248 = scalar_lea.vmem %s1, %s247
        %p249 = pneg %p88
        %p250 = pneg %p85
        %p251 = scmp.lt.s32.totalorder %s23, 1
        %s252 = scalar_select %p251, %s23, 1
        %s253 = smul.addr %s252, 2
        %s254 = scalar_lea.vmem %s2, %s253
        %p255 = pneg %p114
        %p256 = pneg %p111
        %p257 = scmp.lt.s32.totalorder %s23, 1
        %s258 = scalar_select %p257, %s23, 1
        %s259 = scalar_lea.vmem %s3, %s258
        %p260 = pneg %p140
        %p261 = pneg %p137
        %p262 = pneg %p166
        %p263 = pneg %p163
        %s264 = sand.u32 %s153, 1
        %s265 = scalar_lea.sflag [#allocation7], %s264
        %s266 = sand.u32 %s153, 1
        %s267 = scalar_lea.vmem [#allocation6], %s266
        %s268 = smul.u32 2, %s25
        %p269 = scmp.lt.s32.totalorder %s23, 1
        %s270 = scalar_select %p269, %s23, 1
        %p271 = scmp.lt.s32.totalorder %s268, 1
        %s272 = scalar_select %p271, %s268, 1
        %s273 = smul.addr %s270, 4
        %s274 = sadd.s32 %s272, %s273
        %s275 = smul.addr %s274, 4
        %s276 = scalar_lea.vmem %s0, %s275
        %s277 = smul.u32 2, %s25
        %s278 = smul.u32 2, %s25
        %p279 = scmp.lt.s32.totalorder %s23, 1
        %s280 = scalar_select %p279, %s23, 1
        %p281 = scmp.lt.s32.totalorder %s278, 1
        %s282 = scalar_select %p281, %s278, 1
        %s283 = smul.addr %s280, 2
        %s284 = sadd.s32 %s282, %s283
        %s285 = scalar_lea.vmem %s1, %s284
        %s286 = smul.u32 2, %s25
        %p287 = scmp.lt.s32.totalorder %s23, 1
        %s288 = scalar_select %p287, %s23, 1
        %s289 = smul.addr %s288, 2
        %s290 = scalar_lea.vmem %s2, %s289
        %p291 = scmp.lt.s32.totalorder %s23, 1
        %s292 = scalar_select %p291, %s23, 1
        %s293 = scalar_lea.vmem %s3, %s292
        %v295 = vld [vmem:[%s285] sm:$0x3]
        %v296 = vunpack.c.l.b16 %v295
        %v297 = vlaneseq
        %v298 = vshrl.u32 %v297, 7
        %v299 = vadd.s32 %v298, 8
        %v300 = vlaneseq
        %v301 = vshrl.u32 %v300, 7
        %v302 = vsub.s32 0, %v301
        %v303 = vrot.slane %v296, %v302
        %v304 = vlaneseq
        %v305 = vshrl.u32 %v304, 7
        %v306 = vsub.s32 2, %v305
        %v307 = vrot.slane %v296, %v306
        %v308 = vlaneseq
        %v309 = vshrl.u32 %v308, 7
        %v310 = vsub.s32 0, %v309
        %v311 = vrot.slane %v303, %v310
        %v312 = vlaneseq
        %v313 = vshrl.u32 %v312, 7
        %v314 = vsub.s32 0, %v313
        %v315 = vrot.slane %v307, %v314
        %vm316 = vcmp.eq.s32.totalorder %v311, %v298
        %vm317 = vcmp.eq.s32.totalorder %v315, %v298
        %vm318 = vcmp.eq.s32.totalorder %v311, %v299
        %vm319 = vcmp.eq.s32.totalorder %v315, %v299
        %v320 = vsel %vm316, 1, 0
        %v321 = vsel %vm317, 1, 0
        %v322 = vsel %vm318, 1, 0
        %v323 = vsel %vm319, 1, 0
        %v324 = vcvt.s32.f32 %v320
        %v325 = vcvt.s32.f32 %v321
        %v326 = vcvt.s32.f32 %v322
        %v327 = vcvt.s32.f32 %v323
        %v328 = vpack.c.bf16 %v326, %v324
        %v329 = vpack.c.bf16 %v327, %v325
        %p330 = scmp.eq.s32.totalorder %s24, 0
        // Predicated region
        $region37: #{tpu_custom_call.1} parent=35 // pred_check
          %p331 = pneg %p330
        $region38: #{tpu_custom_call.1} parent=35 // pred_check_branch
          %333 = sbr.rel (%p331) target = $region40
        $region39: #{tpu_custom_call.1} parent=35 // pred_region
          %p334 = scmp.eq.s32.totalorder %s25, 0
          // Predicated region
          $region41: #{tpu_custom_call.1} parent=39 // pred_check
            %p335 = pneg %p334
          $region42: #{tpu_custom_call.1} parent=39 // pred_check_branch
            %337 = sbr.rel (%p335) target = $region44
          $region43: #{tpu_custom_call.1} parent=39 // pred_region
            %vm338 = vcmask 130048
            %339 = vst.msk [vmem:[#allocation2] sm:$0xff] %vm338, 0.0
            %vm340 = vcmask 122880
            %341 = vst.msk [vmem:[#allocation2 + $0x8] sm:$0x1] %vm340, 0.0
          $region44: #{tpu_custom_call.1} parent=39 // pred_fallthru
            _
          %v342 = vld [vmem:[%s276] sm:$0xff]
          %v343 = vld [vmem:[%s276 + $0x8] sm:$0x11]
          %v344 = vld [vmem:[#allocation2] sm:$0xff]
          %v345 = vld [vmem:[#allocation2 + $0x8] sm:$0x1]
          %v348 = vunpack.c.l.b16 %v342
          %v349 = vunpack.c.h.b16 %v342
          %v350 = vunpack.c.l.b16 %v343
          %v351 = vunpack.c.h.b16 %v343
          %v352 = vpack.c.b16 %v350, %v348
          %v353 = vpack.c.b16 %v351, %v349
          %356 = vmatprep.subr.bf16.mxu0 %v329
          %357 = vmatpush1.bf16.xpose.msra.mxu0 %v328
          %358 = vmatprep.subr.bf16.mxu0 0
          %359 = vmatpush1.bf16.xpose.msra.mxu0 0
          %360 = vmatprep.subr.bf16.mxu0 0
          %361 = vmatpush1.bf16.xpose.msra.mxu0 0
          %362 = vmatprep.subr.bf16.mxu0 0
          %363 = vmatpush1.bf16.xpose.msra.mxu0 0
          %364 = vmatprep.subr.bf16.mxu0 0
          %365 = vmatpush1.bf16.xpose.msra.mxu0 0
          %366 = vmatprep.subr.bf16.mxu0 0
          %367 = vmatpush1.bf16.xpose.msra.mxu0 0
          %368 = vmatprep.subr.bf16.mxu0 0
          %369 = vmatpush1.bf16.xpose.msra.mxu0 0
          %370 = vmatprep.subr.bf16.mxu0 0
          %371 = vmatpush1.bf16.xpose.msra.mxu0 0
          %372 = vmatprep.subr.bf16.mxu0 0
          %373 = vmatpush1.bf16.xpose.msra.mxu0 0
          %374 = vmatprep.subr.bf16.mxu0 0
          %375 = vmatpush1.bf16.xpose.msra.mxu0 0
          %376 = vmatprep.subr.bf16.mxu0 0
          %377 = vmatpush1.bf16.xpose.msra.mxu0 0
          %378 = vmatprep.subr.bf16.mxu0 0
          %379 = vmatpush1.bf16.xpose.msra.mxu0 0
          %380 = vmatprep.subr.bf16.mxu0 0
          %381 = vmatpush1.bf16.xpose.msra.mxu0 0
          %382 = vmatprep.subr.bf16.mxu0 0
          %383 = vmatpush1.bf16.xpose.msra.mxu0 0
          %384 = vmatprep.subr.bf16.mxu0 0
          %385 = vmatpush1.bf16.xpose.msra.mxu0 0
          %386 = vmatprep.subr.bf16.mxu0 0
          %387 = vmatpush1.bf16.xpose.msra.mxu0 0
          %388 = vmatprep.mubr.bf16.mxu0 %v353
          %389 = vmatmul.mubr.bf16.gmra.mrb[0].mxu0 %v352
          %v390 = vpop.f32.mrb[0].mxu0
          %v391 = vadd.f32 0.0, %v390
          %v392 = vpop.f32.mrb[0].mxu0
          %v393 = vpop.f32.mrb[0].mxu0
          %v394 = vadd.f32 0.0, %v393
          %v395 = vpop.f32.mrb[0].mxu0
          %396 = vdwg.mxu0
          %v397 = vadd.f32 %v344, %v391
          %v398 = vadd.f32 %v345, %v394
          %vm399 = vcmask 130048
          %400 = vst.msk [vmem:[#allocation2] sm:$0xff] %vm399, %v397
          %vm401 = vcmask 122880
          %402 = vst.msk [vmem:[#allocation2 + $0x8] sm:$0x1] %vm401, %v398
        $region40: #{tpu_custom_call.1} parent=35 // pred_fallthru
          _
        %p403 = scmp.eq.s32.totalorder %s24, 1
        // Predicated region
        $region45: #{tpu_custom_call.1} parent=35 // pred_check
          %p404 = pneg %p403
        $region46: #{tpu_custom_call.1} parent=35 // pred_check_branch
          %406 = sbr.rel (%p404) target = $region48
        $region47: #{tpu_custom_call.1} parent=35 // pred_region
          %p407 = scmp.eq.s32.totalorder %s25, 0
          // Predicated region
          $region49: #{tpu_custom_call.1} parent=47 // pred_check
            %p408 = pneg %p407
          $region50: #{tpu_custom_call.1} parent=47 // pred_check_branch
            %410 = sbr.rel (%p408) target = $region52
          $region51: #{tpu_custom_call.1} parent=47 // pred_region
            %v411 = vld [vmem:[#allocation2] sm:$0xff]
            %v412 = vld [vmem:[#allocation2 + $0x8] sm:$0x1]
            %v413 = vmax.f32 %v412, 1.0
            %v414 = vrcp.pop %v413
            %v415 = vmul.f32 %v411, %v411
            %vm416 = vcmask 130048
            %v417 = vsel %vm416, %v415, 0.0
            %v418 = vrot.slane %v417, 4
            %v419 = vadd.f32 %v417, %v418
            %v420 = vrot.slane %v419, 2
            %v421 = vadd.f32 %v419, %v420
            %v422 = vrot.slane %v421, 1
            %v423 = vadd.f32 %v421, %v422
            %v424 = vadd.f32 %v423, 1e-20
            %v425 = vrsqrt.pop %v424
            %v426 = vmul.f32 %v411, %v425
            %v427 = vpack.c.bf16 %v426, %v426
            %vm428 = vcmask 125952
            %429 = vst.msk [vmem:[#allocation3] sm:$0xf] %vm428, %v427
            %v430 = vpack.c.bf16 %v414, %v414
            %vm431 = vcmask 122880
            %vm432 = vsmask.f32 256
            %vm433 = vmand %vm431, %vm432
            %v434 = vld [vmem:[#allocation3 + $0x4] sm:$0x1]
            %v435 = vsel %vm433, %v430, %v434
            %436 = vst [vmem:[#allocation3 + $0x4] sm:$0x1] %v435
            %vm437 = vcmask 0
            %438 = vst.msk [vmem:[#allocation4] sm:$0x1] %vm437, 0.0
            %v439 = vld [vmem:[%s290] sm:$0x3]
            %v440 = vlaneseq
            %v441 = vshrl.u32 %v440, 7
            %v442 = vsub.s32 0, %v441
            %v443 = vrot.slane %v439, %v442
            %vm444 = vcmp.eq.s32.totalorder %v443, %v298
            %vm445 = vcmp.eq.s32.totalorder %v443, %v299
            %v446 = vsel %vm444, 1, 0
            %v447 = vsel %vm445, 1, 0
            %v448 = vcvt.s32.f32 %v446
            %v449 = vcvt.s32.f32 %v447
            %v450 = vlaneseq
            %v451 = vshrl.u32 %v450, 7
            %v452 = vsub.s32 1, %v451
            %v453 = vrot.slane %v439, %v452
            %vm454 = vcmp.eq.s32.totalorder %v453, %v298
            %vm455 = vcmp.eq.s32.totalorder %v453, %v299
            %v456 = vsel %vm454, 1, 0
            %v457 = vsel %vm455, 1, 0
            %v458 = vcvt.s32.f32 %v456
            %v459 = vcvt.s32.f32 %v457
            %v461 = vsel %vm416, %v426, 0
            %463 = vmatprep.subr.mxu0 0.0
            %464 = vmatpush1.msra.mxu0 %v448
            %465 = vmatprep.subr.mxu0 0.0
            %466 = vmatpush1.msra.mxu0 %v449
            %467 = vmatprep.subr.mxu0 0.0
            %468 = vmatpush1.msra.mxu0 0.0
            %469 = vmatprep.subr.mxu0 0.0
            %470 = vmatpush1.msra.mxu0 0.0
            %471 = vmatprep.subr.mxu0 0.0
            %472 = vmatpush1.msra.mxu0 0.0
            %473 = vmatprep.subr.mxu0 0.0
            %474 = vmatpush1.msra.mxu0 0.0
            %475 = vmatprep.subr.mxu0 0.0
            %476 = vmatpush1.msra.mxu0 0.0
            %477 = vmatprep.subr.mxu0 0.0
            %478 = vmatpush1.msra.mxu0 0.0
            %479 = vmatprep.subr.mxu0 0.0
            %480 = vmatpush1.msra.mxu0 0.0
            %481 = vmatprep.subr.mxu0 0.0
            %482 = vmatpush1.msra.mxu0 0.0
            %483 = vmatprep.subr.mxu0 0.0
            %484 = vmatpush1.msra.mxu0 0.0
            %485 = vmatprep.subr.mxu0 0.0
            %486 = vmatpush1.msra.mxu0 0.0
            %487 = vmatprep.subr.mxu0 0.0
            %488 = vmatpush1.msra.mxu0 0.0
            %489 = vmatprep.subr.mxu0 0.0
            %490 = vmatpush1.msra.mxu0 0.0
            %491 = vmatprep.subr.mxu0 0.0
            %492 = vmatpush1.msra.mxu0 0.0
            %493 = vmatprep.subr.mxu0 0.0
            %494 = vmatpush1.msra.mxu0 0.0
            %495 = vmatprep.subr.mxu0 0.0
            %496 = vmatpush1.msra.mxu0 0.0
            %497 = vmatprep.subr.mxu0 0.0
            %498 = vmatpush1.msra.mxu0 0.0
            %499 = vmatprep.subr.mxu0 0.0
            %500 = vmatpush1.msra.mxu0 0.0
            %501 = vmatprep.subr.mxu0 0.0
            %502 = vmatpush1.msra.mxu0 0.0
            %503 = vmatprep.subr.mxu0 0.0
            %504 = vmatpush1.msra.mxu0 0.0
            %505 = vmatprep.subr.mxu0 0.0
            %506 = vmatpush1.msra.mxu0 0.0
            %507 = vmatprep.subr.mxu0 0.0
            %508 = vmatpush1.msra.mxu0 0.0
            %509 = vmatprep.subr.mxu0 0.0
            %510 = vmatpush1.msra.mxu0 0.0
            %511 = vmatprep.subr.mxu0 0.0
            %512 = vmatpush1.msra.mxu0 0.0
            %513 = vmatprep.subr.mxu0 0.0
            %514 = vmatpush1.msra.mxu0 0.0
            %515 = vmatprep.subr.mxu0 0.0
            %516 = vmatpush1.msra.mxu0 0.0
            %517 = vmatprep.subr.mxu0 0.0
            %518 = vmatpush1.msra.mxu0 0.0
            %519 = vmatprep.subr.mxu0 0.0
            %520 = vmatpush1.msra.mxu0 0.0
            %521 = vmatprep.subr.mxu0 0.0
            %522 = vmatpush1.msra.mxu0 0.0
            %523 = vmatprep.subr.mxu0 0.0
            %524 = vmatpush1.msra.mxu0 0.0
            %525 = vmatprep.subr.mxu0 0.0
            %526 = vmatpush1.msra.mxu0 0.0
            %527 = vmatprep.mubr.f32.mxu0 0.0
            %528 = vmatmul.mubr.f32.gmra.mrb[0].mxu0 %v461
            %v529 = vpop.f32.mrb[0].mxu0
            %v530 = vadd.f32 0.0, %v529
            %v531 = vpop.f32.mrb[0].mxu0
            %532 = vdwg.mxu0
            %533 = vmatprep.subr.mxu0 0.0
            %534 = vmatpush1.msra.mxu0 %v458
            %535 = vmatprep.subr.mxu0 0.0
            %536 = vmatpush1.msra.mxu0 %v459
            %537 = vmatprep.subr.mxu0 0.0
            %538 = vmatpush1.msra.mxu0 0.0
            %539 = vmatprep.subr.mxu0 0.0
            %540 = vmatpush1.msra.mxu0 0.0
            %541 = vmatprep.subr.mxu0 0.0
            %542 = vmatpush1.msra.mxu0 0.0
            %543 = vmatprep.subr.mxu0 0.0
            %544 = vmatpush1.msra.mxu0 0.0
            %545 = vmatprep.subr.mxu0 0.0
            %546 = vmatpush1.msra.mxu0 0.0
            %547 = vmatprep.subr.mxu0 0.0
            %548 = vmatpush1.msra.mxu0 0.0
            %549 = vmatprep.subr.mxu0 0.0
            %550 = vmatpush1.msra.mxu0 0.0
            %551 = vmatprep.subr.mxu0 0.0
            %552 = vmatpush1.msra.mxu0 0.0
            %553 = vmatprep.subr.mxu0 0.0
            %554 = vmatpush1.msra.mxu0 0.0
            %555 = vmatprep.subr.mxu0 0.0
            %556 = vmatpush1.msra.mxu0 0.0
            %557 = vmatprep.subr.mxu0 0.0
            %558 = vmatpush1.msra.mxu0 0.0
            %559 = vmatprep.subr.mxu0 0.0
            %560 = vmatpush1.msra.mxu0 0.0
            %561 = vmatprep.subr.mxu0 0.0
            %562 = vmatpush1.msra.mxu0 0.0
            %563 = vmatprep.subr.mxu0 0.0
            %564 = vmatpush1.msra.mxu0 0.0
            %565 = vmatprep.subr.mxu0 0.0
            %566 = vmatpush1.msra.mxu0 0.0
            %567 = vmatprep.subr.mxu0 0.0
            %568 = vmatpush1.msra.mxu0 0.0
            %569 = vmatprep.subr.mxu0 0.0
            %570 = vmatpush1.msra.mxu0 0.0
            %571 = vmatprep.subr.mxu0 0.0
            %572 = vmatpush1.msra.mxu0 0.0
            %573 = vmatprep.subr.mxu0 0.0
            %574 = vmatpush1.msra.mxu0 0.0
            %575 = vmatprep.subr.mxu0 0.0
            %576 = vmatpush1.msra.mxu0 0.0
            %577 = vmatprep.subr.mxu0 0.0
            %578 = vmatpush1.msra.mxu0 0.0
            %579 = vmatprep.subr.mxu0 0.0
            %580 = vmatpush1.msra.mxu0 0.0
            %581 = vmatprep.subr.mxu0 0.0
            %582 = vmatpush1.msra.mxu0 0.0
            %583 = vmatprep.subr.mxu0 0.0
            %584 = vmatpush1.msra.mxu0 0.0
            %585 = vmatprep.subr.mxu0 0.0
            %586 = vmatpush1.msra.mxu0 0.0
            %587 = vmatprep.subr.mxu0 0.0
            %588 = vmatpush1.msra.mxu0 0.0
            %589 = vmatprep.subr.mxu0 0.0
            %590 = vmatpush1.msra.mxu0 0.0
            %591 = vmatprep.subr.mxu0 0.0
            %592 = vmatpush1.msra.mxu0 0.0
            %593 = vmatprep.subr.mxu0 0.0
            %594 = vmatpush1.msra.mxu0 0.0
            %595 = vmatprep.subr.mxu0 0.0
            %596 = vmatpush1.msra.mxu0 0.0
            %597 = vmatprep.mubr.f32.mxu0 0.0
            %598 = vmatmul.mubr.f32.gmra.mrb[0].mxu0 %v461
            %v599 = vpop.f32.mrb[0].mxu0
            %v600 = vadd.f32 0.0, %v599
            %v601 = vpop.f32.mrb[0].mxu0
            %602 = vdwg.mxu0
            %v603 = vmul.f32 %v530, %v600
            %v604 = vrot.slane %v603, 4
            %v605 = vadd.f32 %v603, %v604
            %v606 = vrot.slane %v605, 2
            %v607 = vadd.f32 %v605, %v606
            %v608 = vrot.slane %v607, 1
            %v609 = vadd.f32 %v607, %v608
            %v610 = vsub.f32 1.0, %v609
            %v611 = vld [vmem:[%s293] sm:$0x1]
            %v612 = vmul.f32 %v611, 5.0
            %v613 = vsub.f32 %v612, 2.5
            %v614 = vxor.u32 %v613, 2147483648
            %v615 = vmul.f32 %v614, 1.442695
            %v616 = vpow.pop %v615
            %v617 = vadd.f32 %v616, 1.0
            %v618 = vrcp.pop %v617
            %v619 = vmul.f32 1.0, %v618
            %v620 = vsub.f32 %v619, 0.1
            %v621 = vmul.f32 %v610, %v620
            %v622 = vsub.f32 0.3, %v621
            %v623 = vmax.f32 %v622, 0.0
            %v624 = vlaneseq
            %v625 = vand.u32 %v624, 127
            %vm626 = vcmp.lt.s32.totalorder %v625, 32
            %v627 = vsel %vm626, 1, 0
            %v628 = vcvt.s32.f32 %v627
            %v629 = vmul.f32 %v623, %v628
            %vm630 = vcmask 1040384
            %v631 = vsel %vm630, %v629, 0.0
            %632 = vadd.xlane.f32.xlu0 %v631
            %v633 = vpop.xlane.xlu0 %632
            %v634 = vrot.slane %v633, 4
            %v635 = vadd.f32 %v633, %v634
            %v636 = vrot.slane %v635, 2
            %v637 = vadd.f32 %v635, %v636
            %v638 = vrot.slane %v637, 1
            %v639 = vadd.f32 %v637, %v638
            %s640 = vtos %v639
            %v641 = vstv %s640
            %v642 = vmul.f32 %v641, 0.03125
            %643 = vst.msk [vmem:[#allocation5] sm:$0x1] %vm437, %v642
          $region52: #{tpu_custom_call.1} parent=47 // pred_fallthru
            _
          %v644 = vld [vmem:[%s276] sm:$0xff]
          %v645 = vld [vmem:[#allocation3] sm:$0xf]
          %v646 = vld [vmem:[#allocation3 + $0x4] sm:$0x1]
          %v649 = vunpack.c.l.b16 %v645
          %v650 = vunpack.c.l.b16 %v646
          %v651 = vpack.c.b16 %v650, %v649
          %vm652 = vcmask 130048
          %v654 = vsel %vm652, %v651, 0
          %656 = vmatprep.subr.bf16.mxu0 %v329
          %657 = vmatpush1.bf16.msra.mxu0 %v328
          %658 = vmatprep.subr.bf16.mxu0 0
          %659 = vmatpush1.bf16.msra.mxu0 0
          %660 = vmatprep.subr.bf16.mxu0 0
          %661 = vmatpush1.bf16.msra.mxu0 0
          %662 = vmatprep.subr.bf16.mxu0 0
          %663 = vmatpush1.bf16.msra.mxu0 0
          %664 = vmatprep.subr.bf16.mxu0 0
          %665 = vmatpush1.bf16.msra.mxu0 0
          %666 = vmatprep.subr.bf16.mxu0 0
          %667 = vmatpush1.bf16.msra.mxu0 0
          %668 = vmatprep.subr.bf16.mxu0 0
          %669 = vmatpush1.bf16.msra.mxu0 0
          %670 = vmatprep.subr.bf16.mxu0 0
          %671 = vmatpush1.bf16.msra.mxu0 0
          %672 = vmatprep.subr.bf16.mxu0 0
          %673 = vmatpush1.bf16.msra.mxu0 0
          %674 = vmatprep.subr.bf16.mxu0 0
          %675 = vmatpush1.bf16.msra.mxu0 0
          %676 = vmatprep.subr.bf16.mxu0 0
          %677 = vmatpush1.bf16.msra.mxu0 0
          %678 = vmatprep.subr.bf16.mxu0 0
          %679 = vmatpush1.bf16.msra.mxu0 0
          %680 = vmatprep.subr.bf16.mxu0 0
          %681 = vmatpush1.bf16.msra.mxu0 0
          %682 = vmatprep.subr.bf16.mxu0 0
          %683 = vmatpush1.bf16.msra.mxu0 0
          %684 = vmatprep.subr.bf16.mxu0 0
          %685 = vmatpush1.bf16.msra.mxu0 0
          %686 = vmatprep.subr.bf16.mxu0 0
          %687 = vmatpush1.bf16.msra.mxu0 0
          %688 = vmatprep.mubr.bf16.mxu0 0
          %689 = vmatmul.mubr.bf16.gmra.mrb[0].mxu0 %v654
          %v690 = vpop.f32.mrb[0].mxu0
          %v691 = vadd.f32 0.0, %v690
          %v692 = vpop.f32.mrb[0].mxu0
          %v693 = vadd.f32 0.0, %v692
          %v694 = vpop.f32.mrb[0].mxu0
          %v695 = vadd.f32 0.0, %v694
          %v696 = vpop.f32.mrb[0].mxu0
          %v697 = vadd.f32 0.0, %v696
          %698 = vdwg.mxu0
          %v699 = vunpack.c.l.bf16 %v644
          %v700 = vunpack.c.h.bf16 %v644
          %v701 = vmul.f32 %v691, %v699
          %v702 = vmul.f32 %v693, %v700
          %v703 = vrot.slane %v701, 4
          %v704 = vadd.f32 %v701, %v703
          %v705 = vrot.slane %v704, 2
          %v706 = vadd.f32 %v704, %v705
          %v707 = vrot.slane %v706, 1
          %v708 = vadd.f32 %v706, %v707
          %v709 = vrot.slane %v702, 4
          %v710 = vadd.f32 %v702, %v709
          %v711 = vrot.slane %v710, 2
          %v712 = vadd.f32 %v710, %v711
          %v713 = vrot.slane %v712, 1
          %v714 = vadd.f32 %v712, %v713
          %v715 = vsub.f32 0.9, %v708
          %v716 = vsub.f32 0.9, %v714
          %v717 = vmax.f32 %v715, 0.0
          %v718 = vmax.f32 %v716, 0.0
          %v719 = vmul.f32 %v717, %v695
          %v720 = vmul.f32 %v718, %v697
          %v721 = vld [vmem:[#allocation4] sm:$0x1]
          %vm722 = vcmask 1040384
          %v723 = vsel %vm722, %v719, 0.0
          %v724 = vsel %vm722, %v720, 0.0
          %v725 = vadd.f32 %v723, %v724
          %726 = vadd.xlane.f32.xlu0 %v725
          %v727 = vpop.xlane.xlu0 %726
          %v728 = vrot.slane %v727, 4
          %v729 = vadd.f32 %v727, %v728
          %v730 = vrot.slane %v729, 2
          %v731 = vadd.f32 %v729, %v730
          %v732 = vrot.slane %v731, 1
          %v733 = vadd.f32 %v731, %v732
          %s734 = vtos %v733
          %v735 = vstv %s734
          %v736 = vadd.f32 %v721, %v735
          %vm737 = vcmask 0
          %738 = vst.msk [vmem:[#allocation4] sm:$0x1] %vm737, %v736
        $region48: #{tpu_custom_call.1} parent=35 // pred_fallthru
          _
        %p739 = scmp.eq.s32.totalorder %s25, 0
        %p740 = pnand %p403, %p739
        %p741 = pneg %p740
        // Predicated region
        $region53: #{tpu_custom_call.1} parent=35 // pred_check
          _
        $region54: #{tpu_custom_call.1} parent=35 // pred_check_branch
          %743 = sbr.rel (%p740) target = $region56
        $region55: #{tpu_custom_call.1} parent=35 // pred_region
          %v744 = vld [vmem:[#allocation5] sm:$0x1]
          %v745 = vld [vmem:[#allocation4] sm:$0x1]
          %v746 = vmul.f32 %v745, 0.0625
          %v747 = vadd.f32 %v744, %v746
          %749 = vset.pattern.permute.xlu0 0
          %750 = vperm.xlu0 %749, %v747
          %v751 = vpop.permute.xlu0 %750
          %v753 = vlaneseq
          %v754 = vshrl.u32 %v753, 7
          %v755 = vsub.s32 0, %v754
          %v756 = vrot.slane %v751, %v755
          %757 = vst [vmem:[%s267] sm:$0x1] %v756
        $region56: #{tpu_custom_call.1} parent=35 // pred_fallthru
          _
        %s758 = sand.u32 %s153, 1
        %s759 = scalar_lea.sflag [#allocation7], %s758
        %s760 = sand.u32 %s153, 1
        %s761 = scalar_lea.vmem [#allocation6], %s760
        // Predicated region
        $region57: #{tpu_custom_call.1} parent=35 // pred_check
          %p762 = pneg %p163
        $region58: #{tpu_custom_call.1} parent=35 // pred_check_branch
          %764 = sbr.rel (%p762) target = $region60
        $region59: #{tpu_custom_call.1} parent=35 // pred_region
          %s766 = ssub.s32 16, 16
          %767 = vsyncadd %s759, %s766
          %s768 = smul.addr %s23, 16
          %s769 = scalar_lea.hbm %s4, %s768
          %s771 = sshll.u32 %s761, 4
          %s772 = int_to_ptr.vmem [resolvable:$true] %s771
          %774 = dma.vmem_to_hbm [thread:$0]  %s772, 16, %s769, %s759
        $region60: #{tpu_custom_call.1} parent=35 // pred_fallthru
          _
      $region36: #{tpu_custom_call.1} parent=5 // pred_fallthru
        _
      %p775 = scmp.le.s32.totalorder 2, %s13
      // Predicated region
      $region61: #{tpu_custom_call.1} parent=5 // pred_check
        %p776 = pneg %p775
      $region62: #{tpu_custom_call.1} parent=5 // pred_check_branch
        %778 = sbr.rel (%p776) target = $region64
      $region63: #{tpu_custom_call.1} parent=5 // pred_region
        %s779 = ssub.s32 %s13, 2
        // Predicated region
        $region65: #{tpu_custom_call.1} parent=63 // pred_check
          %p780 = pneg %p169
        $region66: #{tpu_custom_call.1} parent=63 // pred_check_branch
          %782 = sbr.rel (%p780) target = $region68
        $region67: #{tpu_custom_call.1} parent=63 // pred_region
          %s783 = sand.u32 %s154, 1
          %s784 = scalar_lea.sflag [#allocation7], %s783
          %s785 = sand.u32 %s154, 1
          %s786 = scalar_lea.vmem [#allocation6], %s785
          %787 = dma.done %s784, 16
        $region68: #{tpu_custom_call.1} parent=63 // pred_fallthru
          _
      $region64: #{tpu_custom_call.1} parent=5 // pred_fallthru
        _
    $region6: #{tpu_custom_call.1} parent=1 // loop_footer
      %s17 = sadd.s32 1, %s13
    $region7: #{tpu_custom_call.1} parent=1 // loop_footer_branch
      %12 = sbr.rel target = $region3
    $region8: #{tpu_custom_call.1} parent=1 // loop_exit
      _
    %788 = vsyncpa [#allocation7], 1
    %s789 = scalar_lea.sflag [#allocation7], 1
    %790 = vsyncpa %s789, 1

</llo_original>
